<compile_context>
chip_gen: v5e
topology: v5e:2x2
jax: 0.10.0
libtpu: 0.0.40
codegen_flags: <defaults>
</compile_context>

<pallas_src>
import jax
import jax.numpy as jnp
from jax.experimental import pallas as pl
from jax.experimental.pallas import tpu as pltpu

BN_EPS = 1e-5

H1, H2, H3 = 128, 64, 32


def earthquake_mlp_kernel(x_ref, w1_ref, w2_ref, w3_ref, pk_ref, o_ref):
    # Packed small vectors (f32): row 0 = b1(128), row 1 = b2'(64), row 2 = b3'(32),
    # row 3 = w4 as a row (32), row 4 lane 0 = b4.
    b1 = pk_ref[0:1, :]            # (1, 128)
    b2 = pk_ref[1:2, 0:H2]         # (1, 64)
    b3 = pk_ref[2:3, 0:H3]         # (1, 32)
    w4 = pk_ref[3:4, 0:H3]         # (1, 32)
    b4 = pk_ref[4:5, 0:1]          # (1, 1)

    # Cast to bf16 inside the kernel (MXU is bf16-native; f32 matmuls are multi-pass).
    x = x_ref[...].astype(jnp.bfloat16)

    # Linear(F,128) + ReLU   (BN1 already folded into w2/b2)
    h = jnp.dot(x, w1_ref[...], preferred_element_type=jnp.float32) + b1
    h = jnp.maximum(h, 0.0).astype(jnp.bfloat16)

    # Linear(128,64) + ReLU  (BN2 already folded into w3/b3)
    h = jnp.dot(h, w2_ref[...], preferred_element_type=jnp.float32) + b2
    h = jnp.maximum(h, 0.0).astype(jnp.bfloat16)

    # Linear(64,32) + ReLU
    h = jnp.dot(h, w3_ref[...], preferred_element_type=jnp.float32) + b3
    h = jnp.maximum(h, 0.0).astype(jnp.bfloat16)

    # Linear(32,1), produced lane-dense: out_row = w4 (1,32) . h^T (32,tile_b),
    # an NT matmul (contract last dims) -> (1, tile_b). Avoids both an N=1 MXU pass
    # and a 1-lane-wide masked store pattern.
    out_row = jax.lax.dot_general(
        w4.astype(jnp.bfloat16), h,
        dimension_numbers=(((1,), (1,)), ((), ())),
        preferred_element_type=jnp.float32,
    ) + b4
    o_ref[...] = out_row.astype(o_ref.dtype)


def _round_up(v, m):
    return ((v + m - 1) // m) * m


def fold_params(p):
    """Fold eval-mode BatchNorm affine into the following Linear; pack small vectors.

    Matmul weights are returned in bf16 (MXU-native); biases stay f32 in `packed`.
    """
    s1 = p["g1"] * jax.lax.rsqrt(p["v1"] + BN_EPS)          # (1,128)
    t1 = p["be1"] - p["m1"] * s1                            # (1,128)
    w2f = s1.reshape(-1, 1) * p["w2"]                       # (128,64)
    b2f = t1 @ p["w2"] + p["b2"]                            # (1,64)

    s2 = p["g2"] * jax.lax.rsqrt(p["v2"] + BN_EPS)          # (1,64)
    t2 = p["be2"] - p["m2"] * s2                            # (1,64)
    w3f = s2.reshape(-1, 1) * p["w3"]                       # (64,32)
    b3f = t2 @ p["w3"] + p["b3"]                            # (1,32)

    packed = jnp.zeros((8, 128), jnp.float32)
    packed = packed.at[0, :].set(p["b1"][0])
    packed = packed.at[1, :H2].set(b2f[0])
    packed = packed.at[2, :H3].set(b3f[0])
    packed = packed.at[3, :H3].set(p["w4"][:, 0])
    packed = packed.at[4, 0].set(p["b4"][0, 0])

    return (p["w1"].astype(jnp.bfloat16),
            w2f.astype(jnp.bfloat16),
            w3f.astype(jnp.bfloat16),
            packed)


def earthquake_nn_forward(x, params, tile_b=4096):
    """x: (B, input_size) float32. params: PyTorch-shaped dict (see init_params)."""
    B, F = x.shape
    w1, w2f, w3f, packed = fold_params(params)

    # Batch tile: as large as practical, but keep >=2 grid steps when possible so
    # dimension_semantics=("parallel",) can shard the batch across both v7x TCs.
    tile_b = min(tile_b, _round_up(B, 8))
    if B > 8 and pl.cdiv(B, tile_b) < 2:
        tile_b = _round_up(pl.cdiv(B, 2), 8)
    num_tiles = pl.cdiv(B, tile_b)   # ragged last block handled by Pallas (no host pad)

    cost = pl.CostEstimate(
        flops=2 * num_tiles * tile_b * (F * H1 + H1 * H2 + H2 * H3 + H3),
        transcendentals=0,
        bytes_accessed=(4 * B * F
                        + 2 * (F * H1 + H1 * H2 + H2 * H3)
                        + 4 * 8 * 128
                        + 4 * num_tiles * tile_b),
    )

    out = pl.pallas_call(
        earthquake_mlp_kernel,
        out_shape=jax.ShapeDtypeStruct((num_tiles, tile_b), jnp.float32),
        grid=(num_tiles,),
        in_specs=[
            pl.BlockSpec((tile_b, F), lambda i: (i, 0)),    # x: tiled over batch
            pl.BlockSpec((F, H1), lambda i: (0, 0)),        # weights: VMEM-resident
            pl.BlockSpec((H1, H2), lambda i: (0, 0)),
            pl.BlockSpec((H2, H3), lambda i: (0, 0)),
            pl.BlockSpec((8, 128), lambda i: (0, 0)),       # packed biases / w4 / b4
        ],
        out_specs=pl.BlockSpec((1, tile_b), lambda i: (i, 0)),   # lane-dense row/tile
        compiler_params=pltpu.CompilerParams(
            dimension_semantics=("parallel",),
        ),
        cost_estimate=cost,
    )(x, w1, w2f, w3f, packed)

    # (num_tiles, tile_b) -> (B, 1); ragged-tail garbage rows are sliced off.
    return out.reshape(-1)[:B].reshape(B, 1)


def init_params(key, input_size):
    """Deterministic synthetic parameters, PyTorch-shaped then pre-transposed (in,out)."""
    ks = jax.random.split(key, 12)

    def linear(kw, kb, fan_in, fan_out):
        bound = 1.0 / jnp.sqrt(fan_in)
        w = jax.random.uniform(kw, (fan_in, fan_out), jnp.float32, -bound, bound)
        b = jax.random.uniform(kb, (1, fan_out), jnp.float32, -bound, bound)
        return w, b

    w1, b1 = linear(ks[0], ks[1], input_size, H1)
    w2, b2 = linear(ks[2], ks[3], H1, H2)
    w3, b3 = linear(ks[4], ks[5], H2, H3)
    w4, b4 = linear(ks[6], ks[7], H3, 1)

    # BatchNorm1d params (gamma, beta) and running stats (mean, var), eval-mode.
    g1 = jnp.ones((1, H1), jnp.float32)
    be1 = jnp.zeros((1, H1), jnp.float32)
    m1 = 0.1 * jax.random.normal(ks[8], (1, H1), jnp.float32)
    v1 = 1.0 + 0.1 * jax.random.uniform(ks[9], (1, H1), jnp.float32)

    g2 = jnp.ones((1, H2), jnp.float32)
    be2 = jnp.zeros((1, H2), jnp.float32)
    m2 = 0.1 * jax.random.normal(ks[10], (1, H2), jnp.float32)
    v2 = 1.0 + 0.1 * jax.random.uniform(ks[11], (1, H2), jnp.float32)

    return dict(
        w1=w1, b1=b1, g1=g1, be1=be1, m1=m1, v1=v1,
        w2=w2, b2=b2, g2=g2, be2=be2, m2=m2, v2=v2,
        w3=w3, b3=b3, w4=w4, b4=b4,
    )


def reference_forward(x, p):
    """Pure-JAX f32 reference of the original (un-folded) eval-mode forward pass."""
    h = jnp.maximum(x @ p["w1"] + p["b1"], 0.0)
    h = (h - p["m1"]) / jnp.sqrt(p["v1"] + BN_EPS) * p["g1"] + p["be1"]
    # Dropout(0.3): identity in eval mode.
    h = jnp.maximum(h @ p["w2"] + p["b2"], 0.0)
    h = (h - p["m2"]) / jnp.sqrt(p["v2"] + BN_EPS) * p["g2"] + p["be2"]
    # Dropout(0.2): identity in eval mode.
    h = jnp.maximum(h @ p["w3"] + p["b3"], 0.0)
    return h @ p["w4"] + p["b4"]


if __name__ == "__main__":
    key = jax.random.PRNGKey(0)
    k_x, k_p = jax.random.split(key)

    B, input_size = 8, 32
    x = jax.random.normal(k_x, (B, input_size), jnp.float32)
    params = init_params(k_p, input_size)

    out = earthquake_nn_forward(x, params)
    out = jax.block_until_ready(out)

    ref = reference_forward(x, params)
    assert out.shape == (B, 1)
    # bf16 MXU path vs f32 reference: loosened tolerance.
    err = float(jnp.max(jnp.abs(out - ref)))
    assert jnp.allclose(out, ref, atol=5e-2, rtol=5e-2), err

    print("KERNEL_OK")
</pallas_src>

<mosaic_0001>
module attributes {stable_mosaic.version = 11 : i64} {
  func.func @earthquake_mlp_kernel(%arg0: i32, %arg1: memref<8x32xf32, #tpu.memory_space<vmem>>, %arg2: memref<32x128xbf16, #tpu.memory_space<vmem>>, %arg3: memref<128x64xbf16, #tpu.memory_space<vmem>>, %arg4: memref<64x32xbf16, #tpu.memory_space<vmem>>, %arg5: memref<8x128xf32, #tpu.memory_space<vmem>>, %arg6: memref<1x8xf32, #tpu.memory_space<vmem>>) attributes {dimension_semantics = [#tpu.dimension_semantics<parallel>], iteration_bounds = array<i64: 1>, scalar_prefetch = 0 : i64, scratch_operands = 0 : i64, tpu.core_type = #tpu.core_type<tc>, window_params = [{transform_indices = @transform_0, window_bounds = array<i64: 8, 32>}, {pipeline_mode = #tpu.pipeline_mode<synchronous>, transform_indices = @transform_1, window_bounds = array<i64: 32, 128>}, {pipeline_mode = #tpu.pipeline_mode<synchronous>, transform_indices = @transform_2, window_bounds = array<i64: 128, 64>}, {pipeline_mode = #tpu.pipeline_mode<synchronous>, transform_indices = @transform_3, window_bounds = array<i64: 64, 32>}, {pipeline_mode = #tpu.pipeline_mode<synchronous>, transform_indices = @transform_4, window_bounds = array<i64: 8, 128>}, {transform_indices = @transform_5, window_bounds = array<i64: 1, 8>}]} {
    %c0 = arith.constant 0 : index
    %c0_0 = arith.constant 0 : index
    %0 = vector.load %arg5[%c0, %c0_0] : memref<8x128xf32, #tpu.memory_space<vmem>>, vector<1x128xf32>
    %c1 = arith.constant 1 : index
    %c0_1 = arith.constant 0 : index
    %1 = vector.load %arg5[%c1, %c0_1] : memref<8x128xf32, #tpu.memory_space<vmem>>, vector<1x64xf32>
    %c2 = arith.constant 2 : index
    %c0_2 = arith.constant 0 : index
    %2 = vector.load %arg5[%c2, %c0_2] : memref<8x128xf32, #tpu.memory_space<vmem>>, vector<1x32xf32>
    %c3 = arith.constant 3 : index
    %c0_3 = arith.constant 0 : index
    %3 = vector.load %arg5[%c3, %c0_3] : memref<8x128xf32, #tpu.memory_space<vmem>>, vector<1x32xf32>
    %c4 = arith.constant 4 : index
    %c0_4 = arith.constant 0 : index
    %4 = vector.load %arg5[%c4, %c0_4] : memref<8x128xf32, #tpu.memory_space<vmem>>, vector<1x1xf32>
    %c0_5 = arith.constant 0 : index
    %c0_6 = arith.constant 0 : index
    %5 = vector.load %arg1[%c0_5, %c0_6] : memref<8x32xf32, #tpu.memory_space<vmem>>, vector<8x32xf32>
    %6 = arith.truncf %5 : vector<8x32xf32> to vector<8x32xbf16>
    %c0_7 = arith.constant 0 : index
    %c0_8 = arith.constant 0 : index
    %7 = vector.load %arg2[%c0_7, %c0_8] : memref<32x128xbf16, #tpu.memory_space<vmem>>, vector<32x128xbf16>
    %cst = arith.constant dense<0.000000e+00> : vector<8x128xf32>
    %8 = tpu.matmul %6, %7, %cst {dimension_numbers = #tpu.dot_dimension_numbers<[1], [0], [0], [1], [0, 0, 1, 1], [], []>} : vector<8x32xbf16>, vector<32x128xbf16>, vector<8x128xf32> -> vector<8x128xf32>
    %9 = vector.broadcast %0 : vector<1x128xf32> to vector<8x128xf32>
    %10 = arith.addf %8, %9 : vector<8x128xf32>
    %cst_9 = arith.constant 0.000000e+00 : f32
    %11 = vector.broadcast %cst_9 : f32 to vector<8x128xf32>
    %12 = arith.maximumf %10, %11 : vector<8x128xf32>
    %13 = arith.truncf %12 : vector<8x128xf32> to vector<8x128xbf16>
    %c0_10 = arith.constant 0 : index
    %c0_11 = arith.constant 0 : index
    %14 = vector.load %arg3[%c0_10, %c0_11] : memref<128x64xbf16, #tpu.memory_space<vmem>>, vector<128x64xbf16>
    %cst_12 = arith.constant dense<0.000000e+00> : vector<8x64xf32>
    %15 = tpu.matmul %13, %14, %cst_12 {dimension_numbers = #tpu.dot_dimension_numbers<[1], [0], [0], [1], [0, 0, 1, 1], [], []>} : vector<8x128xbf16>, vector<128x64xbf16>, vector<8x64xf32> -> vector<8x64xf32>
    %16 = vector.broadcast %1 : vector<1x64xf32> to vector<8x64xf32>
    %17 = arith.addf %15, %16 : vector<8x64xf32>
    %cst_13 = arith.constant 0.000000e+00 : f32
    %18 = vector.broadcast %cst_13 : f32 to vector<8x64xf32>
    %19 = arith.maximumf %17, %18 : vector<8x64xf32>
    %20 = arith.truncf %19 : vector<8x64xf32> to vector<8x64xbf16>
    %c0_14 = arith.constant 0 : index
    %c0_15 = arith.constant 0 : index
    %21 = vector.load %arg4[%c0_14, %c0_15] : memref<64x32xbf16, #tpu.memory_space<vmem>>, vector<64x32xbf16>
    %cst_16 = arith.constant dense<0.000000e+00> : vector<8x32xf32>
    %22 = tpu.matmul %20, %21, %cst_16 {dimension_numbers = #tpu.dot_dimension_numbers<[1], [0], [0], [1], [0, 0, 1, 1], [], []>} : vector<8x64xbf16>, vector<64x32xbf16>, vector<8x32xf32> -> vector<8x32xf32>
    %23 = vector.broadcast %2 : vector<1x32xf32> to vector<8x32xf32>
    %24 = arith.addf %22, %23 : vector<8x32xf32>
    %cst_17 = arith.constant 0.000000e+00 : f32
    %25 = vector.broadcast %cst_17 : f32 to vector<8x32xf32>
    %26 = arith.maximumf %24, %25 : vector<8x32xf32>
    %27 = arith.truncf %26 : vector<8x32xf32> to vector<8x32xbf16>
    %28 = arith.truncf %3 : vector<1x32xf32> to vector<1x32xbf16>
    %cst_18 = arith.constant dense<0.000000e+00> : vector<1x8xf32>
    %29 = tpu.matmul %28, %27, %cst_18 {dimension_numbers = #tpu.dot_dimension_numbers<[1], [1], [0], [0], [0, 0, 1, 0], [], []>} : vector<1x32xbf16>, vector<8x32xbf16>, vector<1x8xf32> -> vector<1x8xf32>
    %30 = vector.broadcast %4 : vector<1x1xf32> to vector<1x8xf32>
    %31 = arith.addf %29, %30 : vector<1x8xf32>
    %c0_19 = arith.constant 0 : index
    %c0_20 = arith.constant 0 : index
    %32 = vector.load %arg6[%c0_19, %c0_20] : memref<1x8xf32, #tpu.memory_space<vmem>>, vector<1x8xf32>
    tpu.vector_store %arg6[%c0_19, %c0_20], %31 {strides = array<i32>} : memref<1x8xf32, #tpu.memory_space<vmem>>, vector<1x8xf32>,
    return
  }
  func.func @transform_0(%arg0: i32) -> (i32, i32) {
    %c0_i32 = arith.constant 0 : i32
    %c0_i32_0 = arith.constant 0 : i32
    return %arg0, %c0_i32 : i32, i32
  }
  func.func @transform_1(%arg0: i32) -> (i32, i32) {
    %c0_i32 = arith.constant 0 : i32
    %c0_i32_0 = arith.constant 0 : i32
    %c0_i32_1 = arith.constant 0 : i32
    return %c0_i32, %c0_i32_0 : i32, i32
  }
  func.func @transform_2(%arg0: i32) -> (i32, i32) {
    %c0_i32 = arith.constant 0 : i32
    %c0_i32_0 = arith.constant 0 : i32
    %c0_i32_1 = arith.constant 0 : i32
    return %c0_i32, %c0_i32_0 : i32, i32
  }
  func.func @transform_3(%arg0: i32) -> (i32, i32) {
    %c0_i32 = arith.constant 0 : i32
    %c0_i32_0 = arith.constant 0 : i32
    %c0_i32_1 = arith.constant 0 : i32
    return %c0_i32, %c0_i32_0 : i32, i32
  }
  func.func @transform_4(%arg0: i32) -> (i32, i32) {
    %c0_i32 = arith.constant 0 : i32
    %c0_i32_0 = arith.constant 0 : i32
    %c0_i32_1 = arith.constant 0 : i32
    return %c0_i32, %c0_i32_0 : i32, i32
  }
  func.func @transform_5(%arg0: i32) -> (i32, i32) {
    %c0_i32 = arith.constant 0 : i32
    %c0_i32_0 = arith.constant 0 : i32
    return %arg0, %c0_i32 : i32, i32
  }
}

</mosaic_0001>

<llo_original>
// kernel: tpu_custom_call.1
$region0: #{tpu_custom_call.1}
  #allocation0 [shape = 'u32[]', space=smem, size = 0x4, offset = 0x4, fixed_abs, tag = 'smem constant byte address 0x4 - core index']
  #allocation1 [shape = 'u32[72,128]{1,0:T(1,128)}', space=vmem, size = 0x9000, scoped, tag = 'internal scratch']
  %s0 = inlined_call_operand.vmem [shape: f32[8,32], index: 0, kind: input, shape index: {}]
  %s1 = inlined_call_operand.vmem [shape: bf16[32,128], index: 1, kind: input, shape index: {}]
  %s2 = inlined_call_operand.vmem [shape: bf16[128,64], index: 2, kind: input, shape index: {}]
  %s3 = inlined_call_operand.vmem [shape: bf16[64,32], index: 3, kind: input, shape index: {}]
  %s4 = inlined_call_operand.vmem [shape: f32[8,128], index: 4, kind: input, shape index: {}]
  %s5 = inlined_call_operand.hbm [shape: f32[1,8], index: 5, kind: output, shape index: {}]
  %s6 = sld [smem:[#allocation0]]
  $region30: #{tpu_custom_call.1} parent=0
    _
  %s8 = ssub.s32 1, %s6
  %s9 = scalar_select 0, %s8, %s6
  $region1: #{tpu_custom_call.1} parent=0
    #allocation2 [shape = 'u8[512]{0}', space=vmem, size = 0x400, scoped, tag = 'output window, operand 0, single buffered']
    #allocation3 [shape = 's32[1]{0}', space=sflag, size = 0x4, scoped, tag = 'scoped memory for tpu_custom_call.1']
    %10 = vsyncpa [#allocation3], 0
    // Predicated region
    $region2: #{tpu_custom_call.1} parent=1 // pred_check
      _
    $region3: #{tpu_custom_call.1} parent=1 // pred_check_branch
      %12 = sbr.rel (0) target = $region5
    $region4: #{tpu_custom_call.1} parent=1 // pred_region
      _
    $region5: #{tpu_custom_call.1} parent=1 // pred_fallthru
      _
    // Predicated region
    $region6: #{tpu_custom_call.1} parent=1 // pred_check
      _
    $region7: #{tpu_custom_call.1} parent=1 // pred_check_branch
      %14 = sbr.rel (0) target = $region9
    $region8: #{tpu_custom_call.1} parent=1 // pred_region
      _
    $region9: #{tpu_custom_call.1} parent=1 // pred_fallthru
      _
    // Predicated region
    $region10: #{tpu_custom_call.1} parent=1 // pred_check
      _
    $region11: #{tpu_custom_call.1} parent=1 // pred_check_branch
      %16 = sbr.rel (0) target = $region13
    $region12: #{tpu_custom_call.1} parent=1 // pred_region
      _
    $region13: #{tpu_custom_call.1} parent=1 // pred_fallthru
      _
    // Predicated region
    $region14: #{tpu_custom_call.1} parent=1 // pred_check
      _
    $region15: #{tpu_custom_call.1} parent=1 // pred_check_branch
      %18 = sbr.rel (0) target = $region17
    $region16: #{tpu_custom_call.1} parent=1 // pred_region
      _
    $region17: #{tpu_custom_call.1} parent=1 // pred_fallthru
      _
    // Predicated region
    $region18: #{tpu_custom_call.1} parent=1 // pred_check
      _
    $region19: #{tpu_custom_call.1} parent=1 // pred_check_branch
      %20 = sbr.rel (0) target = $region21
    $region20: #{tpu_custom_call.1} parent=1 // pred_region
      _
    $region21: #{tpu_custom_call.1} parent=1 // pred_fallthru
      _
    %v22 = vld [vmem:[%s4] sm:$0x1]
    %v23 = vld [vmem:[%s4 + $0x1] sm:$0x1]
    %v24 = vld [vmem:[%s4 + $0x2] sm:$0x1]
    %v25 = vld [vmem:[%s4 + $0x3] sm:$0x1]
    %v26 = vld [vmem:[%s4 + $0x4] sm:$0x1]
    %v27 = vld [vmem:[%s0] sm:$0xff]
    %v28 = vpack.c.bf16 %v27, %v27
    %v29 = vld [vmem:[%s1] sm:$0xf]
    %v30 = vld [vmem:[%s1 + $0x4] sm:$0xf]
    %v31 = vld [vmem:[%s1 + $0x8] sm:$0xf]
    %v32 = vld [vmem:[%s1 + $0xc] sm:$0xf]
    %v33 = vperm.slane %v22, 0
    %v38 = vunpack.c.l.b16 %v29
    %v39 = vunpack.c.l.b16 %v30
    %v40 = vunpack.c.l.b16 %v31
    %v41 = vunpack.c.l.b16 %v32
    %v42 = vpack.c.b16 %v39, %v38
    %v43 = vpack.c.b16 %v41, %v40
    %vm46 = vcmask 261120
    %v48 = vsel %vm46, %v28, 0
    %50 = vmatpush.bf16.msra.mxu0 0
    %51 = vmatpush.bf16.msra.mxu0 0
    %52 = vmatpush.bf16.msra.mxu0 0
    %53 = vmatpush.bf16.msra.mxu0 0
    %54 = vmatpush.bf16.msra.mxu0 0
    %55 = vmatpush.bf16.msra.mxu0 0
    %56 = vmatpush.bf16.msra.mxu0 %v43
    %57 = vmatpush.bf16.msra.mxu0 %v42
    %58 = vmatmul.bf16.gmra.mxu0 %v48
    %v59 = vpop.f32.mrf.mxu0
    %v60 = vadd.f32 %v33, %v59
    %v61 = vpop.f32.mrf.mxu0
    %62 = vdwg.mxu0
    %v63 = vmax.f32 %v60, 0.0
    %v64 = vpack.c.bf16 %v63, %v63
    %v65 = vld [vmem:[%s2] sm:$0xf]
    %v66 = vld [vmem:[%s2 + $0x4] sm:$0xf]
    %v67 = vld [vmem:[%s2 + $0x8] sm:$0xf]
    %v68 = vld [vmem:[%s2 + $0xc] sm:$0xf]
    %v69 = vld [vmem:[%s2 + $0x10] sm:$0xf]
    %v70 = vld [vmem:[%s2 + $0x14] sm:$0xf]
    %v71 = vld [vmem:[%s2 + $0x18] sm:$0xf]
    %v72 = vld [vmem:[%s2 + $0x1c] sm:$0xf]
    %v73 = vld [vmem:[%s2 + $0x20] sm:$0xf]
    %v74 = vld [vmem:[%s2 + $0x24] sm:$0xf]
    %v75 = vld [vmem:[%s2 + $0x28] sm:$0xf]
    %v76 = vld [vmem:[%s2 + $0x2c] sm:$0xf]
    %v77 = vld [vmem:[%s2 + $0x30] sm:$0xf]
    %v78 = vld [vmem:[%s2 + $0x34] sm:$0xf]
    %v79 = vld [vmem:[%s2 + $0x38] sm:$0xf]
    %v80 = vld [vmem:[%s2 + $0x3c] sm:$0xf]
    %v81 = vperm.slane %v23, 0
    %v98 = vunpack.c.l.b16 %v65
    %v99 = vunpack.c.l.b16 %v66
    %v100 = vunpack.c.l.b16 %v67
    %v101 = vunpack.c.l.b16 %v68
    %v102 = vunpack.c.l.b16 %v69
    %v103 = vunpack.c.l.b16 %v70
    %v104 = vunpack.c.l.b16 %v71
    %v105 = vunpack.c.l.b16 %v72
    %v106 = vunpack.c.l.b16 %v73
    %v107 = vunpack.c.l.b16 %v74
    %v108 = vunpack.c.l.b16 %v75
    %v109 = vunpack.c.l.b16 %v76
    %v110 = vunpack.c.l.b16 %v77
    %v111 = vunpack.c.l.b16 %v78
    %v112 = vunpack.c.l.b16 %v79
    %v113 = vunpack.c.l.b16 %v80
    %v114 = vpack.c.b16 %v99, %v98
    %v115 = vpack.c.b16 %v101, %v100
    %v116 = vpack.c.b16 %v103, %v102
    %v117 = vpack.c.b16 %v105, %v104
    %v118 = vpack.c.b16 %v107, %v106
    %v119 = vpack.c.b16 %v109, %v108
    %v120 = vpack.c.b16 %v111, %v110
    %v121 = vpack.c.b16 %v113, %v112
    %130 = vmatpush.bf16.msra.mxu0 %v121
    %131 = vmatpush.bf16.msra.mxu0 %v120
    %132 = vmatpush.bf16.msra.mxu0 %v119
    %133 = vmatpush.bf16.msra.mxu0 %v118
    %134 = vmatpush.bf16.msra.mxu0 %v117
    %135 = vmatpush.bf16.msra.mxu0 %v116
    %136 = vmatpush.bf16.msra.mxu0 %v115
    %137 = vmatpush.bf16.msra.mxu0 %v114
    %138 = vmatmul.bf16.gmra.mxu0 %v64
    %v139 = vpop.f32.mrf.mxu0
    %v140 = vadd.f32 %v81, %v139
    %v141 = vpop.f32.mrf.mxu0
    %142 = vdwg.mxu0
    %v143 = vmax.f32 %v140, 0.0
    %v144 = vpack.c.bf16 %v143, %v143
    %v145 = vld [vmem:[%s3] sm:$0xf]
    %v146 = vld [vmem:[%s3 + $0x4] sm:$0xf]
    %v147 = vld [vmem:[%s3 + $0x8] sm:$0xf]
    %v148 = vld [vmem:[%s3 + $0xc] sm:$0xf]
    %v149 = vld [vmem:[%s3 + $0x10] sm:$0xf]
    %v150 = vld [vmem:[%s3 + $0x14] sm:$0xf]
    %v151 = vld [vmem:[%s3 + $0x18] sm:$0xf]
    %v152 = vld [vmem:[%s3 + $0x1c] sm:$0xf]
    %v153 = vperm.slane %v24, 0
    %v162 = vunpack.c.l.b16 %v145
    %v163 = vunpack.c.l.b16 %v146
    %v164 = vunpack.c.l.b16 %v147
    %v165 = vunpack.c.l.b16 %v148
    %v166 = vunpack.c.l.b16 %v149
    %v167 = vunpack.c.l.b16 %v150
    %v168 = vunpack.c.l.b16 %v151
    %v169 = vunpack.c.l.b16 %v152
    %v170 = vpack.c.b16 %v163, %v162
    %v171 = vpack.c.b16 %v165, %v164
    %v172 = vpack.c.b16 %v167, %v166
    %v173 = vpack.c.b16 %v169, %v168
    %vm178 = vcmask 523264
    %v180 = vsel %vm178, %v144, 0
    %182 = vmatpush.bf16.msra.mxu0 0
    %183 = vmatpush.bf16.msra.mxu0 0
    %184 = vmatpush.bf16.msra.mxu0 0
    %185 = vmatpush.bf16.msra.mxu0 0
    %186 = vmatpush.bf16.msra.mxu0 %v173
    %187 = vmatpush.bf16.msra.mxu0 %v172
    %188 = vmatpush.bf16.msra.mxu0 %v171
    %189 = vmatpush.bf16.msra.mxu0 %v170
    %190 = vmatmul.bf16.gmra.mxu0 %v180
    %v191 = vpop.f32.mrf.mxu0
    %v192 = vadd.f32 %v153, %v191
    %v193 = vpop.f32.mrf.mxu0
    %194 = vdwg.mxu0
    %v195 = vmax.f32 %v192, 0.0
    %v196 = vpack.c.bf16 %v195, %v195
    %v197 = vpack.c.bf16 %v25, %v25
    %199 = vset.pattern.permute.xlu0 0
    %200 = vperm.xlu0 %199, %v26
    %v201 = vpop.permute.xlu0 %200
    %v204 = vsel %vm46, %v197, 0
    %v207 = vsel %vm46, %v196, 0
    %209 = vmatpush.bf16.xpose.msra.mxu0 0
    %210 = vmatpush.bf16.xpose.msra.mxu0 0
    %211 = vmatpush.bf16.xpose.msra.mxu0 0
    %212 = vmatpush.bf16.xpose.msra.mxu0 0
    %213 = vmatpush.bf16.xpose.msra.mxu0 0
    %214 = vmatpush.bf16.xpose.msra.mxu0 0
    %215 = vmatpush.bf16.xpose.msra.mxu0 0
    %216 = vmatpush.bf16.xpose.msra.mxu0 %v207
    %217 = vmatmul.bf16.gmra.mxu0 %v204
    %v218 = vpop.f32.mrf.mxu0
    %v219 = vadd.f32 %v201, %v218
    %v220 = vpop.f32.mrf.mxu0
    %221 = vdwg.mxu0
    %vm222 = vcmask 57344
    %223 = vst.msk [vmem:[#allocation2] sm:$0x1] %vm222, %v219
    // Predicated region
    $region22: #{tpu_custom_call.1} parent=1 // pred_check
      _
    $region23: #{tpu_custom_call.1} parent=1 // pred_check_branch
      %225 = sbr.rel (0) target = $region25
    $region24: #{tpu_custom_call.1} parent=1 // pred_region
      %227 = vsyncadd [#allocation3], 0
      %s229 = sshll.u32 [#allocation2], 4
      %s230 = int_to_ptr.vmem [resolvable:$true] %s229
      %s231 = sshll.u32 %s5, 4
      %s232 = int_to_ptr.hbm [resolvable:$true] %s231
      %234 = dma.vmem_to_hbm [thread:$0]  %s230, 16, %s232, [#allocation3]
    $region25: #{tpu_custom_call.1} parent=1 // pred_fallthru
      _
    // Predicated region
    $region26: #{tpu_custom_call.1} parent=1 // pred_check
      _
    $region27: #{tpu_custom_call.1} parent=1 // pred_check_branch
      %236 = sbr.rel (0) target = $region29
    $region28: #{tpu_custom_call.1} parent=1 // pred_region
      %238 = dma.done [#allocation3], 16
    $region29: #{tpu_custom_call.1} parent=1 // pred_fallthru
      _
    %239 = vsyncpa [#allocation3], 1

</llo_original>
